<compile_context>
chip_gen: v7x
topology: tpu7x:2x2x1
jax: 0.10.0
libtpu: 0.0.40
codegen_flags: <defaults>
</compile_context>

<pallas_src>
import jax
import jax.numpy as jnp
from jax.experimental import pallas as pl
from jax.experimental.pallas import tpu as pltpu


# ------------------------------ fused kernel --------------------------------

def _down_block_kernel(x_ref, m1_ref, b1_ref, m2_ref, b2_ref,
                       skip_ref, down_ref, hp_ref):
    # x_ref    : (H+2, Cin*(W+2))       zero-padded, channel-major folded input
    # m1_ref   : (3, Cin*(W+2), Cout*(W+2))  banded conv1 weights (one per kh)
    # b1_ref   : (1, Cout*(W+2))        conv1 bias, zero in the W-pad columns
    # m2_ref   : (3, Cout*(W+2), Cout*W)     banded conv2 weights (pool-interleaved cols)
    # b2_ref   : (1, Cout*W)
    # skip_ref : (H, Cout*W)            lane-dense skip output block
    # down_ref : (H//2, Cout*W//2)      lane-dense pooled output block
    # hp_ref   : (H+2, Cout*(W+2))      VMEM scratch: zero-padded conv1 activation
    Hp = x_ref.shape[0]
    H = Hp - 2
    Lmid = m1_ref.shape[-1]
    Lout = m2_ref.shape[-1]
    Hh, Lh = H // 2, Lout // 2

    def conv3x3_relu(src_ref, m_ref, b_ref):
        # 3 accumulating (H, K) x (K, L) MXU matmuls, one per kernel row kh.
        # kw taps + Cin contraction live inside the banded weight, so there is
        # no concat / reshape / relayout in the kernel.
        acc = jnp.dot(src_ref[0:H, :], m_ref[0],
                      preferred_element_type=jnp.float32)
        acc += jnp.dot(src_ref[1:H + 1, :], m_ref[1],
                       preferred_element_type=jnp.float32)
        acc += jnp.dot(src_ref[2:H + 2, :], m_ref[2],
                       preferred_element_type=jnp.float32)
        return jnp.maximum(acc + b_ref[...], 0.0)          # bias + ReLU

    # conv1 + ReLU.  Output is already in the W-padded folded layout
    # (the pad columns of m1/b1 are zero, and ReLU keeps them zero).
    h1 = conv3x3_relu(x_ref, m1_ref, b1_ref)                # (H, Cout*(W+2))

    # 'same' padding in H for conv2: zero ONLY the two border rows of the
    # scratch (re-zeroed every step -> safe under the megacore batch split),
    # then drop the conv1 activation into the interior rows.
    hp_ref[0:1, :] = jnp.zeros((1, Lmid), jnp.float32)
    hp_ref[H + 1:H + 2, :] = jnp.zeros((1, Lmid), jnp.float32)
    hp_ref[1:H + 1, :] = h1

    # conv2 + ReLU (h1 never leaves VMEM).
    skip = conv3x3_relu(hp_ref, m2_ref, b2_ref)              # (H, Cout*W)
    skip_ref[...] = skip                                     # 128-lane dense store

    # Fused 2x2 / stride-2 max pool.
    # Rows: two dense, full-lane-width sublane-strided reads of the block we
    # just wrote (cheap VMEM read-after-write, no HBM traffic).
    even = skip_ref[pl.ds(0, Hh, stride=2), :]               # rows 0,2,4,...
    odd = skip_ref[pl.ds(1, Hh, stride=2), :]                # rows 1,3,5,...
    rmax = jnp.maximum(even, odd)                            # (Hh, Cout*W)
    # Columns: conv2's output lanes are ordered (w%2, co, w//2), so the
    # W-direction reduction is a max over two contiguous lane halves of the
    # in-register value -> no strided / masked lane selection at all.
    down_ref[...] = jnp.maximum(rmax[:, 0:Lh], rmax[:, Lh:Lout])


# ------------------------------ JAX wrapper ----------------------------------

def down_block_forward(x_nchw, params):
    """Fused DownBlock forward. NCHW in, (skip, down) NCHW out."""
    N, Cin, H, W = x_nchw.shape
    Cout = params["w1"].shape[0]
    assert H % 2 == 0 and W % 2 == 0, "MaxPool2d(2) needs even spatial dims"
    Hh, Wh = H // 2, W // 2
    Wp = W + 2
    Lin, Lmid, Lout = Cin * Wp, Cout * Wp, Cout * W
    Lh = Lout // 2
    f32 = jnp.float32

    x = x_nchw.astype(f32)

    # Input: zero-pad H and W, fold channel-major -> (N, H+2, Cin*(W+2)).
    # (A layout transform is needed anyway; the 2 extra pad columns per channel
    #  add ~12% to a tiny input, far cheaper than in-kernel per-channel pads.)
    xz = jnp.pad(x, ((0, 0), (0, 0), (1, 1), (1, 1)))
    xf = jnp.transpose(xz, (0, 2, 1, 3)).reshape(N, H + 2, Lin)

    # Banded conv weights: M[kh][(ci, p), (co, w)] = W[co, ci, kh, p - w]
    # for 0 <= p - w <= 2, else 0.  S is the (kw, p, w) selection tensor.
    kw = jnp.arange(3)[:, None, None]
    p = jnp.arange(Wp)[None, :, None]
    w = jnp.arange(W)[None, None, :]
    S = (p == w + kw).astype(f32)                            # (3, W+2, W)

    # conv1: output columns are W-padded (zeros at each channel's w-pad slots).
    w1t = jnp.transpose(params["w1"].astype(f32), (2, 3, 1, 0))   # (kh,kw,ci,co)
    m1 = jnp.einsum("kpw,hkio->hipow", S, w1t)               # (3,Cin,Wp,Cout,W)
    m1 = jnp.pad(m1, ((0, 0), (0, 0), (0, 0), (0, 0), (1, 1)))
    m1 = m1.reshape(3, Lin, Lmid)

    # conv2: output columns interleaved (w%2, co, w//2) so the kernel's pool
    # W-reduction is a max over two contiguous lane halves.
    w2t = jnp.transpose(params["w2"].astype(f32), (2, 3, 1, 0))
    m2 = jnp.einsum("kpw,hkio->hipow", S, w2t)               # (3,Cout,Wp,Cout,W)
    m2 = m2.reshape(3, Cout, Wp, Cout, Wh, 2)
    m2 = jnp.transpose(m2, (0, 1, 2, 5, 3, 4)).reshape(3, Lmid, Lout)

    # Folded biases (conv1 bias is zero in the W-pad columns so they stay 0).
    b1f = jnp.pad(jnp.broadcast_to(params["b1"].astype(f32)[:, None], (Cout, W)),
                  ((0, 0), (1, 1))).reshape(1, Lmid)
    b2f = jnp.broadcast_to(params["b2"].astype(f32)[None, :, None],
                           (2, Cout, Wh)).reshape(1, Lout)

    flops = 2 * N * 3 * H * (Lin * Lmid + Lmid * Lout)
    bytes_accessed = 4 * (xf.size + m1.size + m2.size + b1f.size + b2f.size
                          + N * H * Lout + N * Hh * Lh)

    skip2d, down2d = pl.pallas_call(
        _down_block_kernel,
        out_shape=(jax.ShapeDtypeStruct((N, H, Lout), f32),
                   jax.ShapeDtypeStruct((N, Hh, Lh), f32)),
        grid=(N,),
        in_specs=[
            pl.BlockSpec((None, H + 2, Lin), lambda n: (n, 0, 0)),
            pl.BlockSpec((3, Lin, Lmid), lambda n: (0, 0, 0)),   # VMEM-resident
            pl.BlockSpec((1, Lmid), lambda n: (0, 0)),
            pl.BlockSpec((3, Lmid, Lout), lambda n: (0, 0, 0)),  # VMEM-resident
            pl.BlockSpec((1, Lout), lambda n: (0, 0)),
        ],
        out_specs=(
            pl.BlockSpec((None, H, Lout), lambda n: (n, 0, 0)),
            pl.BlockSpec((None, Hh, Lh), lambda n: (n, 0, 0)),
        ),
        scratch_shapes=[pltpu.VMEM((H + 2, Lmid), f32)],
        compiler_params=pltpu.CompilerParams(
            dimension_semantics=("parallel",),      # v7x: batch split over 2 TCs
            vmem_limit_bytes=32 * 1024 * 1024),     # headroom; footprint here <1 MiB
        cost_estimate=pl.CostEstimate(
            flops=flops, transcendentals=0, bytes_accessed=bytes_accessed),
    )(xf, m1, b1f, m2, b2f)

    # Un-fold back to NCHW.
    skip = skip2d.reshape(N, H, 2, Cout, Wh)            # (n, h, w%2, co, w//2)
    skip = jnp.transpose(skip, (0, 3, 1, 4, 2)).reshape(N, Cout, H, W)
    down = down2d.reshape(N, Hh, Cout, Wh)
    down = jnp.transpose(down, (0, 2, 1, 3))
    return skip, down


# ----------------------------- reference (JAX) -------------------------------

def _conv_relu_ref(x_nchw, w, b):
    y = jax.lax.conv_general_dilated(
        x_nchw, w, window_strides=(1, 1), padding="SAME",
        dimension_numbers=("NCHW", "OIHW", "NCHW"))
    return jnp.maximum(y + b[None, :, None, None], 0.0)


def down_block_ref(x_nchw, params):
    h = _conv_relu_ref(x_nchw, params["w1"], params["b1"])
    skip = _conv_relu_ref(h, params["w2"], params["b2"])
    down = jax.lax.reduce_window(skip, -jnp.inf, jax.lax.max,
                                 (1, 1, 2, 2), (1, 1, 2, 2), "VALID")
    return skip, down


# ---------------------------------- main --------------------------------------

def _init_params(key, in_channels, out_channels):
    k1, k2, k3, k4 = jax.random.split(key, 4)
    def uconv(k, cout, cin):
        bound = 1.0 / jnp.sqrt(cin * 9.0)
        return jax.random.uniform(k, (cout, cin, 3, 3), jnp.float32, -bound, bound)
    def ubias(k, cout, cin):
        bound = 1.0 / jnp.sqrt(cin * 9.0)
        return jax.random.uniform(k, (cout,), jnp.float32, -bound, bound)
    return {
        "w1": uconv(k1, out_channels, in_channels),
        "b1": ubias(k2, out_channels, in_channels),
        "w2": uconv(k3, out_channels, out_channels),
        "b2": ubias(k4, out_channels, out_channels),
    }


if __name__ == "__main__":
    key = jax.random.PRNGKey(0)
    kx, kp = jax.random.split(key)

    N, Cin, Cout, H, W = 2, 4, 8, 16, 16
    x = jax.random.normal(kx, (N, Cin, H, W), jnp.float32)        # NCHW like PyTorch
    params = _init_params(kp, Cin, Cout)

    skip, down = jax.block_until_ready(down_block_forward(x, params))

    skip_ref, down_ref = down_block_ref(x, params)
    assert skip.shape == (N, Cout, H, W) and down.shape == (N, Cout, H // 2, W // 2)
    assert jnp.allclose(skip, skip_ref, rtol=1e-4, atol=1e-4)
    assert jnp.allclose(down, down_ref, rtol=1e-4, atol=1e-4)

    print("KERNEL_OK")
</pallas_src>

<mosaic_0001>
module attributes {stable_mosaic.version = 11 : i64} {
  func.func @_down_block_kernel(%arg0: i32, %arg1: memref<1x18x72xf32, #tpu.memory_space<vmem>>, %arg2: memref<3x72x144xf32, #tpu.memory_space<vmem>>, %arg3: memref<1x144xf32, #tpu.memory_space<vmem>>, %arg4: memref<3x144x128xf32, #tpu.memory_space<vmem>>, %arg5: memref<1x128xf32, #tpu.memory_space<vmem>>, %arg6: memref<1x16x128xf32, #tpu.memory_space<vmem>>, %arg7: memref<1x8x64xf32, #tpu.memory_space<vmem>>, %arg8: memref<18x144xf32, #tpu.memory_space<vmem>>) attributes {dimension_semantics = [#tpu.dimension_semantics<parallel>], iteration_bounds = array<i64: 2>, scalar_prefetch = 0 : i64, scratch_operands = 1 : i64, tpu.core_type = #tpu.core_type<tc>, window_params = [{transform_indices = @transform_0, window_bounds = array<i64: 1, 18, 72>}, {pipeline_mode = #tpu.pipeline_mode<synchronous>, transform_indices = @transform_1, window_bounds = array<i64: 3, 72, 144>}, {pipeline_mode = #tpu.pipeline_mode<synchronous>, transform_indices = @transform_2, window_bounds = array<i64: 1, 144>}, {pipeline_mode = #tpu.pipeline_mode<synchronous>, transform_indices = @transform_3, window_bounds = array<i64: 3, 144, 128>}, {pipeline_mode = #tpu.pipeline_mode<synchronous>, transform_indices = @transform_4, window_bounds = array<i64: 1, 128>}, {transform_indices = @transform_5, window_bounds = array<i64: 1, 16, 128>}, {transform_indices = @transform_6, window_bounds = array<i64: 1, 8, 64>}]} {
    %c0 = arith.constant 0 : index
    %c0_0 = arith.constant 0 : index
    %c0_1 = arith.constant 0 : index
    %0 = vector.load %arg1[%c0, %c0_0, %c0_1] : memref<1x18x72xf32, #tpu.memory_space<vmem>>, vector<1x16x72xf32>
    %1 = vector.shape_cast %0 : vector<1x16x72xf32> to vector<16x72xf32>
    %c0_2 = arith.constant 0 : index
    %c0_3 = arith.constant 0 : index
    %c0_4 = arith.constant 0 : index
    %2 = vector.load %arg2[%c0_2, %c0_3, %c0_4] : memref<3x72x144xf32, #tpu.memory_space<vmem>>, vector<1x72x144xf32>
    %3 = vector.shape_cast %2 : vector<1x72x144xf32> to vector<72x144xf32>
    %cst = arith.constant dense<0.000000e+00> : vector<16x144xf32>
    %4 = tpu.matmul %1, %3, %cst {dimension_numbers = #tpu.dot_dimension_numbers<[1], [0], [0], [1], [0, 0, 1, 1], [], []>} : vector<16x72xf32>, vector<72x144xf32>, vector<16x144xf32> -> vector<16x144xf32>
    %c0_5 = arith.constant 0 : index
    %c1 = arith.constant 1 : index
    %c0_6 = arith.constant 0 : index
    %5 = vector.load %arg1[%c0_5, %c1, %c0_6] : memref<1x18x72xf32, #tpu.memory_space<vmem>>, vector<1x16x72xf32>
    %6 = vector.shape_cast %5 : vector<1x16x72xf32> to vector<16x72xf32>
    %c1_7 = arith.constant 1 : index
    %c0_8 = arith.constant 0 : index
    %c0_9 = arith.constant 0 : index
    %7 = vector.load %arg2[%c1_7, %c0_8, %c0_9] : memref<3x72x144xf32, #tpu.memory_space<vmem>>, vector<1x72x144xf32>
    %8 = vector.shape_cast %7 : vector<1x72x144xf32> to vector<72x144xf32>
    %cst_10 = arith.constant dense<0.000000e+00> : vector<16x144xf32>
    %9 = tpu.matmul %6, %8, %cst_10 {dimension_numbers = #tpu.dot_dimension_numbers<[1], [0], [0], [1], [0, 0, 1, 1], [], []>} : vector<16x72xf32>, vector<72x144xf32>, vector<16x144xf32> -> vector<16x144xf32>
    %10 = arith.addf %4, %9 : vector<16x144xf32>
    %c0_11 = arith.constant 0 : index
    %c2 = arith.constant 2 : index
    %c0_12 = arith.constant 0 : index
    %11 = vector.load %arg1[%c0_11, %c2, %c0_12] : memref<1x18x72xf32, #tpu.memory_space<vmem>>, vector<1x16x72xf32>
    %12 = vector.shape_cast %11 : vector<1x16x72xf32> to vector<16x72xf32>
    %c2_13 = arith.constant 2 : index
    %c0_14 = arith.constant 0 : index
    %c0_15 = arith.constant 0 : index
    %13 = vector.load %arg2[%c2_13, %c0_14, %c0_15] : memref<3x72x144xf32, #tpu.memory_space<vmem>>, vector<1x72x144xf32>
    %14 = vector.shape_cast %13 : vector<1x72x144xf32> to vector<72x144xf32>
    %cst_16 = arith.constant dense<0.000000e+00> : vector<16x144xf32>
    %15 = tpu.matmul %12, %14, %cst_16 {dimension_numbers = #tpu.dot_dimension_numbers<[1], [0], [0], [1], [0, 0, 1, 1], [], []>} : vector<16x72xf32>, vector<72x144xf32>, vector<16x144xf32> -> vector<16x144xf32>
    %16 = arith.addf %10, %15 : vector<16x144xf32>
    %c0_17 = arith.constant 0 : index
    %c0_18 = arith.constant 0 : index
    %17 = vector.load %arg3[%c0_17, %c0_18] : memref<1x144xf32, #tpu.memory_space<vmem>>, vector<1x144xf32>
    %18 = vector.broadcast %17 : vector<1x144xf32> to vector<16x144xf32>
    %19 = arith.addf %16, %18 : vector<16x144xf32>
    %cst_19 = arith.constant 0.000000e+00 : f32
    %20 = vector.broadcast %cst_19 : f32 to vector<16x144xf32>
    %21 = arith.maximumf %19, %20 : vector<16x144xf32>
    %cst_20 = arith.constant 0.000000e+00 : f32
    %22 = vector.broadcast %cst_20 : f32 to vector<1x144xf32>
    %c0_21 = arith.constant 0 : index
    %c0_22 = arith.constant 0 : index
    %23 = vector.load %arg8[%c0_21, %c0_22] : memref<18x144xf32, #tpu.memory_space<vmem>>, vector<1x144xf32>
    tpu.vector_store %arg8[%c0_21, %c0_22], %22 {strides = array<i32>} : memref<18x144xf32, #tpu.memory_space<vmem>>, vector<1x144xf32>,
    %cst_23 = arith.constant 0.000000e+00 : f32
    %24 = vector.broadcast %cst_23 : f32 to vector<1x144xf32>
    %c17 = arith.constant 17 : index
    %c0_24 = arith.constant 0 : index
    %25 = vector.load %arg8[%c17, %c0_24] : memref<18x144xf32, #tpu.memory_space<vmem>>, vector<1x144xf32>
    tpu.vector_store %arg8[%c17, %c0_24], %24 {strides = array<i32>} : memref<18x144xf32, #tpu.memory_space<vmem>>, vector<1x144xf32>,
    %c1_25 = arith.constant 1 : index
    %c0_26 = arith.constant 0 : index
    %26 = vector.load %arg8[%c1_25, %c0_26] : memref<18x144xf32, #tpu.memory_space<vmem>>, vector<16x144xf32>
    tpu.vector_store %arg8[%c1_25, %c0_26], %21 {strides = array<i32>} : memref<18x144xf32, #tpu.memory_space<vmem>>, vector<16x144xf32>,
    %c0_27 = arith.constant 0 : index
    %c0_28 = arith.constant 0 : index
    %27 = vector.load %arg8[%c0_27, %c0_28] : memref<18x144xf32, #tpu.memory_space<vmem>>, vector<16x144xf32>
    %c0_29 = arith.constant 0 : index
    %c0_30 = arith.constant 0 : index
    %c0_31 = arith.constant 0 : index
    %28 = vector.load %arg4[%c0_29, %c0_30, %c0_31] : memref<3x144x128xf32, #tpu.memory_space<vmem>>, vector<1x144x128xf32>
    %29 = vector.shape_cast %28 : vector<1x144x128xf32> to vector<144x128xf32>
    %cst_32 = arith.constant dense<0.000000e+00> : vector<16x128xf32>
    %30 = tpu.matmul %27, %29, %cst_32 {dimension_numbers = #tpu.dot_dimension_numbers<[1], [0], [0], [1], [0, 0, 1, 1], [], []>} : vector<16x144xf32>, vector<144x128xf32>, vector<16x128xf32> -> vector<16x128xf32>
    %c1_33 = arith.constant 1 : index
    %c0_34 = arith.constant 0 : index
    %31 = vector.load %arg8[%c1_33, %c0_34] : memref<18x144xf32, #tpu.memory_space<vmem>>, vector<16x144xf32>
    %c1_35 = arith.constant 1 : index
    %c0_36 = arith.constant 0 : index
    %c0_37 = arith.constant 0 : index
    %32 = vector.load %arg4[%c1_35, %c0_36, %c0_37] : memref<3x144x128xf32, #tpu.memory_space<vmem>>, vector<1x144x128xf32>
    %33 = vector.shape_cast %32 : vector<1x144x128xf32> to vector<144x128xf32>
    %cst_38 = arith.constant dense<0.000000e+00> : vector<16x128xf32>
    %34 = tpu.matmul %31, %33, %cst_38 {dimension_numbers = #tpu.dot_dimension_numbers<[1], [0], [0], [1], [0, 0, 1, 1], [], []>} : vector<16x144xf32>, vector<144x128xf32>, vector<16x128xf32> -> vector<16x128xf32>
    %35 = arith.addf %30, %34 : vector<16x128xf32>
    %c2_39 = arith.constant 2 : index
    %c0_40 = arith.constant 0 : index
    %36 = vector.load %arg8[%c2_39, %c0_40] : memref<18x144xf32, #tpu.memory_space<vmem>>, vector<16x144xf32>
    %c2_41 = arith.constant 2 : index
    %c0_42 = arith.constant 0 : index
    %c0_43 = arith.constant 0 : index
    %37 = vector.load %arg4[%c2_41, %c0_42, %c0_43] : memref<3x144x128xf32, #tpu.memory_space<vmem>>, vector<1x144x128xf32>
    %38 = vector.shape_cast %37 : vector<1x144x128xf32> to vector<144x128xf32>
    %cst_44 = arith.constant dense<0.000000e+00> : vector<16x128xf32>
    %39 = tpu.matmul %36, %38, %cst_44 {dimension_numbers = #tpu.dot_dimension_numbers<[1], [0], [0], [1], [0, 0, 1, 1], [], []>} : vector<16x144xf32>, vector<144x128xf32>, vector<16x128xf32> -> vector<16x128xf32>
    %40 = arith.addf %35, %39 : vector<16x128xf32>
    %c0_45 = arith.constant 0 : index
    %c0_46 = arith.constant 0 : index
    %41 = vector.load %arg5[%c0_45, %c0_46] : memref<1x128xf32, #tpu.memory_space<vmem>>, vector<1x128xf32>
    %42 = vector.broadcast %41 : vector<1x128xf32> to vector<16x128xf32>
    %43 = arith.addf %40, %42 : vector<16x128xf32>
    %cst_47 = arith.constant 0.000000e+00 : f32
    %44 = vector.broadcast %cst_47 : f32 to vector<16x128xf32>
    %45 = arith.maximumf %43, %44 : vector<16x128xf32>
    %c0_48 = arith.constant 0 : index
    %c0_49 = arith.constant 0 : index
    %c0_50 = arith.constant 0 : index
    %46 = vector.load %arg6[%c0_48, %c0_49, %c0_50] : memref<1x16x128xf32, #tpu.memory_space<vmem>>, vector<1x16x128xf32>
    %47 = vector.shape_cast %46 : vector<1x16x128xf32> to vector<16x128xf32>
    %48 = vector.shape_cast %45 : vector<16x128xf32> to vector<1x16x128xf32>
    tpu.vector_store %arg6[%c0_48, %c0_49, %c0_50], %48 {strides = array<i32>} : memref<1x16x128xf32, #tpu.memory_space<vmem>>, vector<1x16x128xf32>,
    %c0_51 = arith.constant 0 : index
    %c0_52 = arith.constant 0 : index
    %c0_53 = arith.constant 0 : index
    %49 = tpu.strided_load %arg6[%c0_51, %c0_52, %c0_53] {strides = array<i32: 1, 2, 1>} : memref<1x16x128xf32, #tpu.memory_space<vmem>>, vector<1x8x128xf32>
    %50 = vector.shape_cast %49 : vector<1x8x128xf32> to vector<8x128xf32>
    %c0_54 = arith.constant 0 : index
    %c1_55 = arith.constant 1 : index
    %c0_56 = arith.constant 0 : index
    %51 = tpu.strided_load %arg6[%c0_54, %c1_55, %c0_56] {strides = array<i32: 1, 2, 1>} : memref<1x16x128xf32, #tpu.memory_space<vmem>>, vector<1x8x128xf32>
    %52 = vector.shape_cast %51 : vector<1x8x128xf32> to vector<8x128xf32>
    %53 = arith.maximumf %50, %52 : vector<8x128xf32>
    %54 = vector.extract_strided_slice %53 {offsets = [0, 0], sizes = [8, 64], strides = [1, 1]} : vector<8x128xf32> to vector<8x64xf32>
    %55 = vector.extract_strided_slice %53 {offsets = [0, 64], sizes = [8, 64], strides = [1, 1]} : vector<8x128xf32> to vector<8x64xf32>
    %56 = arith.maximumf %54, %55 : vector<8x64xf32>
    %c0_57 = arith.constant 0 : index
    %c0_58 = arith.constant 0 : index
    %c0_59 = arith.constant 0 : index
    %57 = vector.load %arg7[%c0_57, %c0_58, %c0_59] : memref<1x8x64xf32, #tpu.memory_space<vmem>>, vector<1x8x64xf32>
    %58 = vector.shape_cast %57 : vector<1x8x64xf32> to vector<8x64xf32>
    %59 = vector.shape_cast %56 : vector<8x64xf32> to vector<1x8x64xf32>
    tpu.vector_store %arg7[%c0_57, %c0_58, %c0_59], %59 {strides = array<i32>} : memref<1x8x64xf32, #tpu.memory_space<vmem>>, vector<1x8x64xf32>,
    return
  }
  func.func @transform_0(%arg0: i32) -> (i32, i32, i32) {
    %c0_i32 = arith.constant 0 : i32
    %c0_i32_0 = arith.constant 0 : i32
    %c0_i32_1 = arith.constant 0 : i32
    return %arg0, %c0_i32, %c0_i32_0 : i32, i32, i32
  }
  func.func @transform_1(%arg0: i32) -> (i32, i32, i32) {
    %c0_i32 = arith.constant 0 : i32
    %c0_i32_0 = arith.constant 0 : i32
    %c0_i32_1 = arith.constant 0 : i32
    %c0_i32_2 = arith.constant 0 : i32
    return %c0_i32, %c0_i32_0, %c0_i32_1 : i32, i32, i32
  }
  func.func @transform_2(%arg0: i32) -> (i32, i32) {
    %c0_i32 = arith.constant 0 : i32
    %c0_i32_0 = arith.constant 0 : i32
    %c0_i32_1 = arith.constant 0 : i32
    return %c0_i32, %c0_i32_0 : i32, i32
  }
  func.func @transform_3(%arg0: i32) -> (i32, i32, i32) {
    %c0_i32 = arith.constant 0 : i32
    %c0_i32_0 = arith.constant 0 : i32
    %c0_i32_1 = arith.constant 0 : i32
    %c0_i32_2 = arith.constant 0 : i32
    return %c0_i32, %c0_i32_0, %c0_i32_1 : i32, i32, i32
  }
  func.func @transform_4(%arg0: i32) -> (i32, i32) {
    %c0_i32 = arith.constant 0 : i32
    %c0_i32_0 = arith.constant 0 : i32
    %c0_i32_1 = arith.constant 0 : i32
    return %c0_i32, %c0_i32_0 : i32, i32
  }
  func.func @transform_5(%arg0: i32) -> (i32, i32, i32) {
    %c0_i32 = arith.constant 0 : i32
    %c0_i32_0 = arith.constant 0 : i32
    %c0_i32_1 = arith.constant 0 : i32
    return %arg0, %c0_i32, %c0_i32_0 : i32, i32, i32
  }
  func.func @transform_6(%arg0: i32) -> (i32, i32, i32) {
    %c0_i32 = arith.constant 0 : i32
    %c0_i32_0 = arith.constant 0 : i32
    %c0_i32_1 = arith.constant 0 : i32
    return %arg0, %c0_i32, %c0_i32_0 : i32, i32, i32
  }
}

</mosaic_0001>

<llo_original>
// kernel: tpu_custom_call.1
$region0: #{tpu_custom_call.1}
  #allocation0 [shape = 'u32[]', space=smem, size = 0x4, offset = 0x4, fixed_abs, tag = 'smem constant byte address 0x4 - core index']
  #allocation1 [shape = 'u32[144,128]{1,0:T(1,128)}', space=vmem, size = 0x12000, scoped, tag = 'internal scratch']
  #allocation2 [shape = 'f32[18,144]{1,0:T(8,128)}', space=vmem, size = 0x6000, scoped, tag = 'scratch operand']
  %s0 = inlined_call_operand.vmem [shape: f32[2,18,72], index: 0, kind: input, shape index: {}]
  %s1 = inlined_call_operand.hbm [shape: f32[3,72,144], index: 1, kind: input, shape index: {}]
  %s2 = inlined_call_operand.vmem [shape: f32[1,144], index: 2, kind: input, shape index: {}]
  %s3 = inlined_call_operand.hbm [shape: f32[3,144,128], index: 3, kind: input, shape index: {}]
  %s4 = inlined_call_operand.vmem [shape: f32[1,128], index: 4, kind: input, shape index: {}]
  %s5 = inlined_call_operand.hbm [shape: f32[2,16,128], index: 5, kind: output, shape index: {0}]
  %s6 = inlined_call_operand.hbm [shape: f32[2,8,64], index: 6, kind: output, shape index: {1}]
  %7 = xla_tuple %s5, %s6
  %s8 = sld [smem:[#allocation0]]
  $region69: #{tpu_custom_call.1} parent=0
    _
  %s10 = ssub.s32 1, %s8
  %s11 = scalar_select 0, %s10, %s8
  $region1: #{tpu_custom_call.1} parent=0
    #allocation3 [shape = 'u8[221184]{0}', space=vmem, size = 0x36000, scoped, tag = 'input window, operand 1, single buffered']
    #allocation4 [shape = 's32[2]{0}', space=sflag, size = 0x8, scoped, tag = 'scoped memory for tpu_custom_call.1']
    #allocation5 [shape = 's32[2]{0}', space=sflag, size = 0x8, scoped, tag = 'scoped memory for tpu_custom_call.1']
    #allocation6 [shape = 'u8[221184]{0}', space=vmem, size = 0x36000, scoped, tag = 'input window, operand 3, single buffered']
    #allocation7 [shape = 's32[1]{0}', space=sflag, size = 0x4, scoped, tag = 'scoped memory for tpu_custom_call.1']
    #allocation8 [shape = 'u8[16384]{0}', space=vmem, size = 0x4000, scoped, tag = 'output window, operand 0']
    #allocation9 [shape = 'u8[8192]{0}', space=vmem, size = 0x2000, scoped, tag = 'output window, operand 1']
    #allocation10 [shape = 's32[2]{0}', space=sflag, size = 0x8, scoped, tag = 'scoped memory for tpu_custom_call.1']
    %12 = vsyncpa [#allocation4], 0
    %13 = vsyncpa [#allocation7], 0
    %14 = vsyncpa [#allocation5], 0
    %s15 = scalar_lea.sflag [#allocation5], 1
    %16 = vsyncpa %s15, 0
    %17 = vsyncpa [#allocation10], 0
    %s18 = scalar_lea.sflag [#allocation10], 1
    %19 = vsyncpa %s18, 0
    loop: start=0, step=1, limit=4
    $region2: #{tpu_custom_call.1} parent=1 // loop_pre_header
      _
    $region3: #{tpu_custom_call.1} parent=1 // loop_header
      %s21 = sphi 0, %s25
      %p22 = scmp.ge.s32.totalorder %s21, 4
      %s31 = sphi 0, %s33
      %s34 = sphi 0, %s31
      %s35 = sphi 0, %s34
      %s51 = sphi 0, %s35
      %s55 = sphi 0, %s55
      %s57 = sphi 0, %s55
      %s58 = sphi 0, %s57
      %s72 = sphi 0, %s58
      %s76 = sphi 0, %s76
      %s78 = sphi 0, %s76
      %s79 = sphi 0, %s78
      %s93 = sphi 0, %s79
      %s97 = sphi 0, %s97
      %s99 = sphi 0, %s97
      %s100 = sphi 0, %s99
      %s114 = sphi 0, %s100
      %s118 = sphi 0, %s118
      %s120 = sphi 0, %s118
      %s121 = sphi 0, %s120
      %s135 = sphi 0, %s121
      %s141 = sphi 0, %s143
      %s144 = sphi 0, %s141
      %s145 = sphi 0, %s144
      %s161 = sphi 0, %s145
      %s167 = sphi 0, %s169
      %s170 = sphi 0, %s167
      %s171 = sphi 0, %s170
      %s187 = sphi 0, %s171
    $region4: #{tpu_custom_call.1} parent=1 // loop_header_branch
      %24 = sbr.rel (%p22) target = $region8
    $region5: #{tpu_custom_call.1} parent=1 // loop_body
      %s26 = ssub.s32 %s21, 1
      %s27 = ssub.s32 %s21, 2
      %s28 = sadd.s32 %s21, 1
      %s29 = ssub.s32 %s21, %s28
      %p30 = scmp.eq.s32.totalorder %s29, 0
      %s32 = sadd.s32 %s31, 1
      %s33 = scalar_select %p30, %s31, %s32
      %p36 = pneg %p30
      %p37 = scmp.eq.s32.totalorder %s21, 1
      %p38 = por %p36, %p37
      %p39 = scmp.ne.s32.totalorder %s31, %s34
      %p40 = scmp.eq.s32.totalorder %s21, 0
      %p41 = por %p39, %p40
      %p42 = scmp.ne.s32.totalorder %s31, %s34
      %p43 = scmp.eq.s32.totalorder %s26, 1
      %p44 = por %p42, %p43
      %p45 = scmp.ne.s32.totalorder %s34, %s35
      %p46 = scmp.eq.s32.totalorder %s26, 0
      %p47 = por %p45, %p46
      %p48 = scmp.ne.s32.totalorder %s34, %s35
      %p49 = scmp.eq.s32.totalorder %s27, 1
      %p50 = por %p48, %p49
      %p52 = scmp.ne.s32.totalorder %s35, %s51
      %p53 = scmp.eq.s32.totalorder %s27, 0
      %p54 = por %p52, %p53
      %s56 = sadd.s32 %s55, 1
      %p59 = scmp.eq.s32.totalorder %s21, 1
      %p60 = scmp.ne.s32.totalorder %s55, %s57
      %p61 = scmp.eq.s32.totalorder %s21, 0
      %p62 = por %p60, %p61
      %p63 = scmp.ne.s32.totalorder %s55, %s57
      %p64 = scmp.eq.s32.totalorder %s26, 1
      %p65 = por %p63, %p64
      %p66 = scmp.ne.s32.totalorder %s57, %s58
      %p67 = scmp.eq.s32.totalorder %s26, 0
      %p68 = por %p66, %p67
      %p69 = scmp.ne.s32.totalorder %s57, %s58
      %p70 = scmp.eq.s32.totalorder %s27, 1
      %p71 = por %p69, %p70
      %p73 = scmp.ne.s32.totalorder %s58, %s72
      %p74 = scmp.eq.s32.totalorder %s27, 0
      %p75 = por %p73, %p74
      %s77 = sadd.s32 %s76, 1
      %p80 = scmp.eq.s32.totalorder %s21, 1
      %p81 = scmp.ne.s32.totalorder %s76, %s78
      %p82 = scmp.eq.s32.totalorder %s21, 0
      %p83 = por %p81, %p82
      %p84 = scmp.ne.s32.totalorder %s76, %s78
      %p85 = scmp.eq.s32.totalorder %s26, 1
      %p86 = por %p84, %p85
      %p87 = scmp.ne.s32.totalorder %s78, %s79
      %p88 = scmp.eq.s32.totalorder %s26, 0
      %p89 = por %p87, %p88
      %p90 = scmp.ne.s32.totalorder %s78, %s79
      %p91 = scmp.eq.s32.totalorder %s27, 1
      %p92 = por %p90, %p91
      %p94 = scmp.ne.s32.totalorder %s79, %s93
      %p95 = scmp.eq.s32.totalorder %s27, 0
      %p96 = por %p94, %p95
      %s98 = sadd.s32 %s97, 1
      %p101 = scmp.eq.s32.totalorder %s21, 1
      %p102 = scmp.ne.s32.totalorder %s97, %s99
      %p103 = scmp.eq.s32.totalorder %s21, 0
      %p104 = por %p102, %p103
      %p105 = scmp.ne.s32.totalorder %s97, %s99
      %p106 = scmp.eq.s32.totalorder %s26, 1
      %p107 = por %p105, %p106
      %p108 = scmp.ne.s32.totalorder %s99, %s100
      %p109 = scmp.eq.s32.totalorder %s26, 0
      %p110 = por %p108, %p109
      %p111 = scmp.ne.s32.totalorder %s99, %s100
      %p112 = scmp.eq.s32.totalorder %s27, 1
      %p113 = por %p111, %p112
      %p115 = scmp.ne.s32.totalorder %s100, %s114
      %p116 = scmp.eq.s32.totalorder %s27, 0
      %p117 = por %p115, %p116
      %s119 = sadd.s32 %s118, 1
      %p122 = scmp.eq.s32.totalorder %s21, 1
      %p123 = scmp.ne.s32.totalorder %s118, %s120
      %p124 = scmp.eq.s32.totalorder %s21, 0
      %p125 = por %p123, %p124
      %p126 = scmp.ne.s32.totalorder %s118, %s120
      %p127 = scmp.eq.s32.totalorder %s26, 1
      %p128 = por %p126, %p127
      %p129 = scmp.ne.s32.totalorder %s120, %s121
      %p130 = scmp.eq.s32.totalorder %s26, 0
      %p131 = por %p129, %p130
      %p132 = scmp.ne.s32.totalorder %s120, %s121
      %p133 = scmp.eq.s32.totalorder %s27, 1
      %p134 = por %p132, %p133
      %p136 = scmp.ne.s32.totalorder %s121, %s135
      %p137 = scmp.eq.s32.totalorder %s27, 0
      %p138 = por %p136, %p137
      %s139 = ssub.s32 %s21, %s28
      %p140 = scmp.eq.s32.totalorder %s139, 0
      %s142 = sadd.s32 %s141, 1
      %s143 = scalar_select %p140, %s141, %s142
      %p146 = pneg %p140
      %p147 = scmp.eq.s32.totalorder %s21, 1
      %p148 = por %p146, %p147
      %p149 = scmp.ne.s32.totalorder %s141, %s144
      %p150 = scmp.eq.s32.totalorder %s21, 0
      %p151 = por %p149, %p150
      %p152 = scmp.ne.s32.totalorder %s141, %s144
      %p153 = scmp.eq.s32.totalorder %s26, 1
      %p154 = por %p152, %p153
      %p155 = scmp.ne.s32.totalorder %s144, %s145
      %p156 = scmp.eq.s32.totalorder %s26, 0
      %p157 = por %p155, %p156
      %p158 = scmp.ne.s32.totalorder %s144, %s145
      %p159 = scmp.eq.s32.totalorder %s27, 1
      %p160 = por %p158, %p159
      %p162 = scmp.ne.s32.totalorder %s145, %s161
      %p163 = scmp.eq.s32.totalorder %s27, 0
      %p164 = por %p162, %p163
      %s165 = ssub.s32 %s21, %s28
      %p166 = scmp.eq.s32.totalorder %s165, 0
      %s168 = sadd.s32 %s167, 1
      %s169 = scalar_select %p166, %s167, %s168
      %p172 = pneg %p166
      %p173 = scmp.eq.s32.totalorder %s21, 1
      %p174 = por %p172, %p173
      %p175 = scmp.ne.s32.totalorder %s167, %s170
      %p176 = scmp.eq.s32.totalorder %s21, 0
      %p177 = por %p175, %p176
      %p178 = scmp.ne.s32.totalorder %s167, %s170
      %p179 = scmp.eq.s32.totalorder %s26, 1
      %p180 = por %p178, %p179
      %p181 = scmp.ne.s32.totalorder %s170, %s171
      %p182 = scmp.eq.s32.totalorder %s26, 0
      %p183 = por %p181, %p182
      %p184 = scmp.ne.s32.totalorder %s170, %s171
      %p185 = scmp.eq.s32.totalorder %s27, 1
      %p186 = por %p184, %p185
      %p188 = scmp.ne.s32.totalorder %s171, %s187
      %p189 = scmp.eq.s32.totalorder %s27, 0
      %p190 = por %p188, %p189
      %p191 = scmp.le.s32.totalorder 1, %s21
      %p192 = scmp.lt.s32.totalorder %s21, 3
      %p193 = pnand %p191, %p192
      %p194 = pneg %p193
      // Predicated region
      $region9: #{tpu_custom_call.1} parent=5 // pred_check
        _
      $region10: #{tpu_custom_call.1} parent=5 // pred_check_branch
        %196 = sbr.rel (%p193) target = $region12
      $region11: #{tpu_custom_call.1} parent=5 // pred_region
        %s197 = ssub.s32 %s21, 1
        // Predicated region
        $region13: #{tpu_custom_call.1} parent=11 // pred_check
          %p198 = pneg %p68
        $region14: #{tpu_custom_call.1} parent=11 // pred_check_branch
          %200 = sbr.rel (%p198) target = $region16
        $region15: #{tpu_custom_call.1} parent=11 // pred_region
          %s202 = ssub.s32 6912, 6912
          %203 = vsyncadd [#allocation4], %s202
          %s204 = sshll.u32 [#allocation3], 4
          %s205 = int_to_ptr.vmem [resolvable:$true] %s204
          %210 = dma.hbm_to_vmem [thread:$0]  %s1, 6912, %s205, [#allocation4], 256, 256, 16
        $region16: #{tpu_custom_call.1} parent=11 // pred_fallthru
          _
        // Predicated region
        $region17: #{tpu_custom_call.1} parent=11 // pred_check
          %p211 = pneg %p89
        $region18: #{tpu_custom_call.1} parent=11 // pred_check_branch
          %213 = sbr.rel (%p211) target = $region20
        $region19: #{tpu_custom_call.1} parent=11 // pred_region
          _
        $region20: #{tpu_custom_call.1} parent=11 // pred_fallthru
          _
        // Predicated region
        $region21: #{tpu_custom_call.1} parent=11 // pred_check
          %p214 = pneg %p110
        $region22: #{tpu_custom_call.1} parent=11 // pred_check_branch
          %216 = sbr.rel (%p214) target = $region24
        $region23: #{tpu_custom_call.1} parent=11 // pred_region
          %s218 = ssub.s32 6912, 6912
          %219 = vsyncadd [#allocation7], %s218
          %s220 = sshll.u32 [#allocation6], 4
          %s221 = int_to_ptr.vmem [resolvable:$true] %s220
          %226 = dma.hbm_to_vmem [thread:$0]  %s3, 6912, %s221, [#allocation7], 128, 128, 8
        $region24: #{tpu_custom_call.1} parent=11 // pred_fallthru
          _
        // Predicated region
        $region25: #{tpu_custom_call.1} parent=11 // pred_check
          %p227 = pneg %p131
        $region26: #{tpu_custom_call.1} parent=11 // pred_check_branch
          %229 = sbr.rel (%p227) target = $region28
        $region27: #{tpu_custom_call.1} parent=11 // pred_region
          _
        $region28: #{tpu_custom_call.1} parent=11 // pred_fallthru
          _
      $region12: #{tpu_custom_call.1} parent=5 // pred_fallthru
        _
      %p230 = scmp.lt.s32.totalorder %s21, 2
      // Predicated region
      $region29: #{tpu_custom_call.1} parent=5 // pred_check
        %p231 = pneg %p230
      $region30: #{tpu_custom_call.1} parent=5 // pred_check_branch
        %233 = sbr.rel (%p231) target = $region32
      $region31: #{tpu_custom_call.1} parent=5 // pred_region
        // Predicated region
        $region33: #{tpu_custom_call.1} parent=31 // pred_check
          %p234 = pneg %p41
        $region34: #{tpu_custom_call.1} parent=31 // pred_check_branch
          %236 = sbr.rel (%p234) target = $region36
        $region35: #{tpu_custom_call.1} parent=31 // pred_region
          %p237 = scmp.lt.s32.totalorder %s21, 1
          %s238 = scalar_select %p237, %s21, 1
          %s239 = smul.addr %s238, 3
          %s240 = smul.addr %s239, 8
          %s241 = scalar_lea.vmem %s0, %s240
        $region36: #{tpu_custom_call.1} parent=31 // pred_fallthru
          _
      $region32: #{tpu_custom_call.1} parent=5 // pred_fallthru
        _
      %p242 = scmp.le.s32.totalorder 1, %s21
      %p243 = scmp.lt.s32.totalorder %s21, 3
      %p244 = pnand %p242, %p243
      %p245 = pneg %p244
      // Predicated region
      $region37: #{tpu_custom_call.1} parent=5 // pred_check
        _
      $region38: #{tpu_custom_call.1} parent=5 // pred_check_branch
        %247 = sbr.rel (%p244) target = $region40
      $region39: #{tpu_custom_call.1} parent=5 // pred_region
        %s248 = ssub.s32 %s21, 1
        // Predicated region
        $region41: #{tpu_custom_call.1} parent=39 // pred_check
          %p249 = pneg %p68
        $region42: #{tpu_custom_call.1} parent=39 // pred_check_branch
          %251 = sbr.rel (%p249) target = $region44
        $region43: #{tpu_custom_call.1} parent=39 // pred_region
          %252 = dma.done [#allocation4], 6912
        $region44: #{tpu_custom_call.1} parent=39 // pred_fallthru
          _
        // Predicated region
        $region45: #{tpu_custom_call.1} parent=39 // pred_check
          %p253 = pneg %p110
        $region46: #{tpu_custom_call.1} parent=39 // pred_check_branch
          %255 = sbr.rel (%p253) target = $region48
        $region47: #{tpu_custom_call.1} parent=39 // pred_region
          %256 = dma.done [#allocation7], 6912
        $region48: #{tpu_custom_call.1} parent=39 // pred_fallthru
          _
        %p257 = scmp.lt.s32.totalorder %s26, 1
        %s258 = scalar_select %p257, %s26, 1
        %s259 = smul.addr %s258, 3
        %s260 = smul.addr %s259, 8
        %s261 = scalar_lea.vmem %s0, %s260
        %p262 = pneg %p47
        %p263 = pneg %p44
        %p264 = pneg %p68
        %p265 = pneg %p65
        %p266 = pneg %p89
        %p267 = pneg %p86
        %p268 = pneg %p110
        %p269 = pneg %p107
        %p270 = pneg %p131
        %p271 = pneg %p128
        %p272 = pneg %p157
        %p273 = pneg %p154
        %s274 = sand.u32 %s144, 1
        %s275 = scalar_lea.sflag [#allocation5], %s274
        %s276 = sand.u32 %s144, 1
        %s277 = smul.addr %s276, 16
        %s278 = scalar_lea.vmem [#allocation8], %s277
        %p279 = pneg %p183
        %p280 = pneg %p180
        %s281 = sand.u32 %s170, 1
        %s282 = scalar_lea.sflag [#allocation10], %s281
        %s283 = sand.u32 %s170, 1
        %s284 = smul.addr %s283, 8
        %s285 = scalar_lea.vmem [#allocation9], %s284
        %p286 = scmp.lt.s32.totalorder %s26, 1
        %s287 = scalar_select %p286, %s26, 1
        %s288 = smul.addr %s287, 3
        %s289 = smul.addr %s288, 8
        %s290 = scalar_lea.vmem %s0, %s289
        %v291 = vld [vmem:[%s290] sm:$0xff]
        %v292 = vld [vmem:[%s290 + $0x8] sm:$0xff]
        %v293 = vld [vmem:[#allocation3] sm:$0xff]
        %v294 = vld [vmem:[#allocation3 + $0x8] sm:$0xff]
        %v295 = vld [vmem:[#allocation3 + $0x10] sm:$0xff]
        %v296 = vld [vmem:[#allocation3 + $0x18] sm:$0xff]
        %v297 = vld [vmem:[#allocation3 + $0x20] sm:$0xff]
        %v298 = vld [vmem:[#allocation3 + $0x28] sm:$0xff]
        %v299 = vld [vmem:[#allocation3 + $0x30] sm:$0xff]
        %v300 = vld [vmem:[#allocation3 + $0x38] sm:$0xff]
        %v301 = vld [vmem:[#allocation3 + $0x40] sm:$0xff]
        %v302 = vld [vmem:[#allocation3 + $0x48] sm:$0xff]
        %v303 = vld [vmem:[#allocation3 + $0x50] sm:$0xff]
        %v304 = vld [vmem:[#allocation3 + $0x58] sm:$0xff]
        %v305 = vld [vmem:[#allocation3 + $0x60] sm:$0xff]
        %v306 = vld [vmem:[#allocation3 + $0x68] sm:$0xff]
        %v307 = vld [vmem:[#allocation3 + $0x70] sm:$0xff]
        %v308 = vld [vmem:[#allocation3 + $0x78] sm:$0xff]
        %v309 = vld [vmem:[#allocation3 + $0x80] sm:$0xff]
        %v310 = vld [vmem:[#allocation3 + $0x88] sm:$0xff]
        %v311 = vld [vmem:[%s290 + $0x1] sm:$0xff]
        %v312 = vld [vmem:[%s290 + $0x9] sm:$0xff]
        %s313 = scalar_lea.vmem [#allocation3], 144
        %v314 = vld [vmem:[%s313] sm:$0xff]
        %v315 = vld [vmem:[%s313 + $0x8] sm:$0xff]
        %v316 = vld [vmem:[%s313 + $0x10] sm:$0xff]
        %v317 = vld [vmem:[%s313 + $0x18] sm:$0xff]
        %v318 = vld [vmem:[%s313 + $0x20] sm:$0xff]
        %v319 = vld [vmem:[%s313 + $0x28] sm:$0xff]
        %v320 = vld [vmem:[%s313 + $0x30] sm:$0xff]
        %v321 = vld [vmem:[%s313 + $0x38] sm:$0xff]
        %v322 = vld [vmem:[%s313 + $0x40] sm:$0xff]
        %v323 = vld [vmem:[%s313 + $0x48] sm:$0xff]
        %v324 = vld [vmem:[%s313 + $0x50] sm:$0xff]
        %v325 = vld [vmem:[%s313 + $0x58] sm:$0xff]
        %v326 = vld [vmem:[%s313 + $0x60] sm:$0xff]
        %v327 = vld [vmem:[%s313 + $0x68] sm:$0xff]
        %v328 = vld [vmem:[%s313 + $0x70] sm:$0xff]
        %v329 = vld [vmem:[%s313 + $0x78] sm:$0xff]
        %v330 = vld [vmem:[%s313 + $0x80] sm:$0xff]
        %v331 = vld [vmem:[%s313 + $0x88] sm:$0xff]
        %vm332 = vcmask 588800
        %v334 = vsel %vm332, %v311, 0
        %v337 = vsel %vm332, %v312, 0
        %339 = vmatprep.subr.mxu0 %v315
        %340 = vmatpush1.msra.mxu0 %v314
        %341 = vmatprep.subr.mxu0 %v317
        %342 = vmatpush1.msra.mxu0 %v316
        %343 = vmatprep.subr.mxu0 %v319
        %344 = vmatpush1.msra.mxu0 %v318
        %345 = vmatprep.subr.mxu0 %v321
        %346 = vmatpush1.msra.mxu0 %v320
        %347 = vmatprep.subr.mxu0 %v323
        %348 = vmatpush1.msra.mxu0 %v322
        %349 = vmatprep.subr.mxu0 %v325
        %350 = vmatpush1.msra.mxu0 %v324
        %351 = vmatprep.subr.mxu0 %v327
        %352 = vmatpush1.msra.mxu0 %v326
        %353 = vmatprep.subr.mxu0 %v329
        %354 = vmatpush1.msra.mxu0 %v328
        %355 = vmatprep.subr.mxu0 %v331
        %356 = vmatpush1.msra.mxu0 %v330
        %357 = vmatprep.subr.mxu0 0.0
        %358 = vmatpush1.msra.mxu0 0.0
        %359 = vmatprep.subr.mxu0 0.0
        %360 = vmatpush1.msra.mxu0 0.0
        %361 = vmatprep.subr.mxu0 0.0
        %362 = vmatpush1.msra.mxu0 0.0
        %363 = vmatprep.subr.mxu0 0.0
        %364 = vmatpush1.msra.mxu0 0.0
        %365 = vmatprep.subr.mxu0 0.0
        %366 = vmatpush1.msra.mxu0 0.0
        %367 = vmatprep.subr.mxu0 0.0
        %368 = vmatpush1.msra.mxu0 0.0
        %369 = vmatprep.subr.mxu0 0.0
        %370 = vmatpush1.msra.mxu0 0.0
        %371 = vmatprep.subr.mxu0 0.0
        %372 = vmatpush1.msra.mxu0 0.0
        %373 = vmatprep.subr.mxu0 0.0
        %374 = vmatpush1.msra.mxu0 0.0
        %375 = vmatprep.subr.mxu0 0.0
        %376 = vmatpush1.msra.mxu0 0.0
        %377 = vmatprep.subr.mxu0 0.0
        %378 = vmatpush1.msra.mxu0 0.0
        %379 = vmatprep.subr.mxu0 0.0
        %380 = vmatpush1.msra.mxu0 0.0
        %381 = vmatprep.subr.mxu0 0.0
        %382 = vmatpush1.msra.mxu0 0.0
        %383 = vmatprep.subr.mxu0 0.0
        %384 = vmatpush1.msra.mxu0 0.0
        %385 = vmatprep.subr.mxu0 0.0
        %386 = vmatpush1.msra.mxu0 0.0
        %387 = vmatprep.subr.mxu0 0.0
        %388 = vmatpush1.msra.mxu0 0.0
        %389 = vmatprep.subr.mxu0 0.0
        %390 = vmatpush1.msra.mxu0 0.0
        %391 = vmatprep.subr.mxu0 0.0
        %392 = vmatpush1.msra.mxu0 0.0
        %393 = vmatprep.subr.mxu0 0.0
        %394 = vmatpush1.msra.mxu0 0.0
        %395 = vmatprep.subr.mxu0 0.0
        %396 = vmatpush1.msra.mxu0 0.0
        %397 = vmatprep.subr.mxu0 0.0
        %398 = vmatpush1.msra.mxu0 0.0
        %399 = vmatprep.subr.mxu0 0.0
        %400 = vmatpush1.msra.mxu0 0.0
        %401 = vmatprep.subr.mxu0 0.0
        %402 = vmatpush1.msra.mxu0 0.0
        %403 = vmatprep.mubr.f32.mxu0 0.0
        %404 = vmatmul.mubr.f32.gmra.mrb[0].mxu0 %v334
        %v405 = vpop.f32.mrb[0].mxu0
        %v406 = vadd.f32 0.0, %v405
        %v407 = vpop.f32.mrb[0].mxu0
        %v408 = vadd.f32 0.0, %v407
        %409 = vmatprep.mubr.f32.mxu0 0.0
        %410 = vmatmul.mubr.f32.gmra.mrb[0].mxu0 %v337
        %v411 = vpop.f32.mrb[0].mxu0
        %v412 = vadd.f32 0.0, %v411
        %v413 = vpop.f32.mrb[0].mxu0
        %v414 = vadd.f32 0.0, %v413
        %415 = vdwg.mxu0
        %v417 = vsel %vm332, %v291, 0
        %v420 = vsel %vm332, %v292, 0
        %422 = vmatprep.subr.mxu0 %v294
        %423 = vmatpush1.msra.mxu0 %v293
        %424 = vmatprep.subr.mxu0 %v296
        %425 = vmatpush1.msra.mxu0 %v295
        %426 = vmatprep.subr.mxu0 %v298
        %427 = vmatpush1.msra.mxu0 %v297
        %428 = vmatprep.subr.mxu0 %v300
        %429 = vmatpush1.msra.mxu0 %v299
        %430 = vmatprep.subr.mxu0 %v302
        %431 = vmatpush1.msra.mxu0 %v301
        %432 = vmatprep.subr.mxu0 %v304
        %433 = vmatpush1.msra.mxu0 %v303
        %434 = vmatprep.subr.mxu0 %v306
        %435 = vmatpush1.msra.mxu0 %v305
        %436 = vmatprep.subr.mxu0 %v308
        %437 = vmatpush1.msra.mxu0 %v307
        %438 = vmatprep.subr.mxu0 %v310
        %439 = vmatpush1.msra.mxu0 %v309
        %440 = vmatprep.subr.mxu0 0.0
        %441 = vmatpush1.msra.mxu0 0.0
        %442 = vmatprep.subr.mxu0 0.0
        %443 = vmatpush1.msra.mxu0 0.0
        %444 = vmatprep.subr.mxu0 0.0
        %445 = vmatpush1.msra.mxu0 0.0
        %446 = vmatprep.subr.mxu0 0.0
        %447 = vmatpush1.msra.mxu0 0.0
        %448 = vmatprep.subr.mxu0 0.0
        %449 = vmatpush1.msra.mxu0 0.0
        %450 = vmatprep.subr.mxu0 0.0
        %451 = vmatpush1.msra.mxu0 0.0
        %452 = vmatprep.subr.mxu0 0.0
        %453 = vmatpush1.msra.mxu0 0.0
        %454 = vmatprep.subr.mxu0 0.0
        %455 = vmatpush1.msra.mxu0 0.0
        %456 = vmatprep.subr.mxu0 0.0
        %457 = vmatpush1.msra.mxu0 0.0
        %458 = vmatprep.subr.mxu0 0.0
        %459 = vmatpush1.msra.mxu0 0.0
        %460 = vmatprep.subr.mxu0 0.0
        %461 = vmatpush1.msra.mxu0 0.0
        %462 = vmatprep.subr.mxu0 0.0
        %463 = vmatpush1.msra.mxu0 0.0
        %464 = vmatprep.subr.mxu0 0.0
        %465 = vmatpush1.msra.mxu0 0.0
        %466 = vmatprep.subr.mxu0 0.0
        %467 = vmatpush1.msra.mxu0 0.0
        %468 = vmatprep.subr.mxu0 0.0
        %469 = vmatpush1.msra.mxu0 0.0
        %470 = vmatprep.subr.mxu0 0.0
        %471 = vmatpush1.msra.mxu0 0.0
        %472 = vmatprep.subr.mxu0 0.0
        %473 = vmatpush1.msra.mxu0 0.0
        %474 = vmatprep.subr.mxu0 0.0
        %475 = vmatpush1.msra.mxu0 0.0
        %476 = vmatprep.subr.mxu0 0.0
        %477 = vmatpush1.msra.mxu0 0.0
        %478 = vmatprep.subr.mxu0 0.0
        %479 = vmatpush1.msra.mxu0 0.0
        %480 = vmatprep.subr.mxu0 0.0
        %481 = vmatpush1.msra.mxu0 0.0
        %482 = vmatprep.subr.mxu0 0.0
        %483 = vmatpush1.msra.mxu0 0.0
        %484 = vmatprep.subr.mxu0 0.0
        %485 = vmatpush1.msra.mxu0 0.0
        %486 = vmatprep.mubr.f32.mxu0 0.0
        %487 = vmatmul.mubr.f32.gmra.mrb[0].mxu0 %v417
        %v488 = vpop.f32.mrb[0].mxu0
        %v489 = vadd.f32 %v406, %v488
        %v490 = vpop.f32.mrb[0].mxu0
        %v491 = vadd.f32 %v408, %v490
        %492 = vmatprep.mubr.f32.mxu0 0.0
        %493 = vmatmul.mubr.f32.gmra.mrb[0].mxu0 %v420
        %v494 = vpop.f32.mrb[0].mxu0
        %v495 = vadd.f32 %v412, %v494
        %v496 = vpop.f32.mrb[0].mxu0
        %v497 = vadd.f32 %v414, %v496
        %498 = vdwg.mxu0
        %v499 = vld [vmem:[%s290 + $0x2] sm:$0xff]
        %v500 = vld [vmem:[%s290 + $0xa] sm:$0xff]
        %s501 = scalar_lea.vmem [#allocation3], 288
        %v502 = vld [vmem:[%s501] sm:$0xff]
        %v503 = vld [vmem:[%s501 + $0x8] sm:$0xff]
        %v504 = vld [vmem:[%s501 + $0x10] sm:$0xff]
        %v505 = vld [vmem:[%s501 + $0x18] sm:$0xff]
        %v506 = vld [vmem:[%s501 + $0x20] sm:$0xff]
        %v507 = vld [vmem:[%s501 + $0x28] sm:$0xff]
        %v508 = vld [vmem:[%s501 + $0x30] sm:$0xff]
        %v509 = vld [vmem:[%s501 + $0x38] sm:$0xff]
        %v510 = vld [vmem:[%s501 + $0x40] sm:$0xff]
        %v511 = vld [vmem:[%s501 + $0x48] sm:$0xff]
        %v512 = vld [vmem:[%s501 + $0x50] sm:$0xff]
        %v513 = vld [vmem:[%s501 + $0x58] sm:$0xff]
        %v514 = vld [vmem:[%s501 + $0x60] sm:$0xff]
        %v515 = vld [vmem:[%s501 + $0x68] sm:$0xff]
        %v516 = vld [vmem:[%s501 + $0x70] sm:$0xff]
        %v517 = vld [vmem:[%s501 + $0x78] sm:$0xff]
        %v518 = vld [vmem:[%s501 + $0x80] sm:$0xff]
        %v519 = vld [vmem:[%s501 + $0x88] sm:$0xff]
        %v521 = vsel %vm332, %v499, 0
        %v524 = vsel %vm332, %v500, 0
        %526 = vmatprep.subr.mxu0 %v503
        %527 = vmatpush1.msra.mxu0 %v502
        %528 = vmatprep.subr.mxu0 %v505
        %529 = vmatpush1.msra.mxu0 %v504
        %530 = vmatprep.subr.mxu0 %v507
        %531 = vmatpush1.msra.mxu0 %v506
        %532 = vmatprep.subr.mxu0 %v509
        %533 = vmatpush1.msra.mxu0 %v508
        %534 = vmatprep.subr.mxu0 %v511
        %535 = vmatpush1.msra.mxu0 %v510
        %536 = vmatprep.subr.mxu0 %v513
        %537 = vmatpush1.msra.mxu0 %v512
        %538 = vmatprep.subr.mxu0 %v515
        %539 = vmatpush1.msra.mxu0 %v514
        %540 = vmatprep.subr.mxu0 %v517
        %541 = vmatpush1.msra.mxu0 %v516
        %542 = vmatprep.subr.mxu0 %v519
        %543 = vmatpush1.msra.mxu0 %v518
        %544 = vmatprep.subr.mxu0 0.0
        %545 = vmatpush1.msra.mxu0 0.0
        %546 = vmatprep.subr.mxu0 0.0
        %547 = vmatpush1.msra.mxu0 0.0
        %548 = vmatprep.subr.mxu0 0.0
        %549 = vmatpush1.msra.mxu0 0.0
        %550 = vmatprep.subr.mxu0 0.0
        %551 = vmatpush1.msra.mxu0 0.0
        %552 = vmatprep.subr.mxu0 0.0
        %553 = vmatpush1.msra.mxu0 0.0
        %554 = vmatprep.subr.mxu0 0.0
        %555 = vmatpush1.msra.mxu0 0.0
        %556 = vmatprep.subr.mxu0 0.0
        %557 = vmatpush1.msra.mxu0 0.0
        %558 = vmatprep.subr.mxu0 0.0
        %559 = vmatpush1.msra.mxu0 0.0
        %560 = vmatprep.subr.mxu0 0.0
        %561 = vmatpush1.msra.mxu0 0.0
        %562 = vmatprep.subr.mxu0 0.0
        %563 = vmatpush1.msra.mxu0 0.0
        %564 = vmatprep.subr.mxu0 0.0
        %565 = vmatpush1.msra.mxu0 0.0
        %566 = vmatprep.subr.mxu0 0.0
        %567 = vmatpush1.msra.mxu0 0.0
        %568 = vmatprep.subr.mxu0 0.0
        %569 = vmatpush1.msra.mxu0 0.0
        %570 = vmatprep.subr.mxu0 0.0
        %571 = vmatpush1.msra.mxu0 0.0
        %572 = vmatprep.subr.mxu0 0.0
        %573 = vmatpush1.msra.mxu0 0.0
        %574 = vmatprep.subr.mxu0 0.0
        %575 = vmatpush1.msra.mxu0 0.0
        %576 = vmatprep.subr.mxu0 0.0
        %577 = vmatpush1.msra.mxu0 0.0
        %578 = vmatprep.subr.mxu0 0.0
        %579 = vmatpush1.msra.mxu0 0.0
        %580 = vmatprep.subr.mxu0 0.0
        %581 = vmatpush1.msra.mxu0 0.0
        %582 = vmatprep.subr.mxu0 0.0
        %583 = vmatpush1.msra.mxu0 0.0
        %584 = vmatprep.subr.mxu0 0.0
        %585 = vmatpush1.msra.mxu0 0.0
        %586 = vmatprep.subr.mxu0 0.0
        %587 = vmatpush1.msra.mxu0 0.0
        %588 = vmatprep.subr.mxu0 0.0
        %589 = vmatpush1.msra.mxu0 0.0
        %590 = vmatprep.mubr.f32.mxu0 0.0
        %591 = vmatmul.mubr.f32.gmra.mrb[0].mxu0 %v521
        %v592 = vpop.f32.mrb[0].mxu0
        %v593 = vadd.f32 0.0, %v592
        %v594 = vpop.f32.mrb[0].mxu0
        %v595 = vadd.f32 0.0, %v594
        %596 = vmatprep.mubr.f32.mxu0 0.0
        %597 = vmatmul.mubr.f32.gmra.mrb[0].mxu0 %v524
        %v598 = vpop.f32.mrb[0].mxu0
        %v599 = vadd.f32 0.0, %v598
        %v600 = vpop.f32.mrb[0].mxu0
        %v601 = vadd.f32 0.0, %v600
        %602 = vdwg.mxu0
        %v603 = vadd.f32 %v489, %v593
        %v604 = vadd.f32 %v491, %v595
        %v605 = vadd.f32 %v495, %v599
        %v606 = vadd.f32 %v497, %v601
        %v607 = vld [vmem:[%s2] sm:$0x3]
        %v609 = vlaneseq
        %v610 = vshrl.u32 %v609, 7
        %v611 = vsub.s32 0, %v610
        %v612 = vrot.slane %v607, %v611
        %v613 = vlaneseq
        %v614 = vshrl.u32 %v613, 7
        %v615 = vsub.s32 1, %v614
        %v616 = vrot.slane %v607, %v615
        %v619 = vadd.f32 %v603, %v612
        %v620 = vadd.f32 %v604, %v616
        %v621 = vadd.f32 %v605, %v612
        %v622 = vadd.f32 %v606, %v616
        %v623 = vmax.f32 %v619, 0.0
        %v624 = vmax.f32 %v620, 0.0
        %v625 = vmax.f32 %v621, 0.0
        %v626 = vmax.f32 %v622, 0.0
        %v627 = vlaneseq
        %vm628 = vcmp.ge.s32.totalorder %v627, 0
        %vm629 = vcmp.lt.s32.totalorder %v627, 144
        %vm630 = vmand %vm628, %vm629
        %631 = vst.msk [vmem:[#allocation2] ss:$8 sm:$0x3] %vm630, 0.0
        %632 = vst.msk [vmem:[#allocation2] ss:$8 sm:$0x0] %vm630, 0.0
        %s633 = scalar_lea.vmem [#allocation2], 33
        %634 = vst.msk [vmem:[%s633] ss:$8 sm:$0x3] %vm630, 0.0
        %635 = vst.msk [vmem:[%s633] ss:$8 sm:$0x0] %vm630, 0.0
        %vm640 = vcmask 1040384
        %v641 = vrot.slane %v623, 7
        %v642 = vrot.slane %v624, 7
        %v643 = vrot.slane %v625, 7
        %v644 = vsel %vm640, %v641, %v643
        %v645 = vrot.slane %v626, 7
        %v646 = vsel %vm640, %v642, %v645
        %653 = vst [vmem:[#allocation2] sm:$0xfe] %v641
        %vm654 = vcmask 130049
        %655 = vst.msk [vmem:[#allocation2 + $0x8] sm:$0xfe] %vm654, %v642
        %656 = vst [vmem:[#allocation2 + $0x10] sm:$0xff] %v644
        %vm657 = vcmask 130048
        %658 = vst.msk [vmem:[#allocation2 + $0x18] sm:$0xff] %vm657, %v646
        %659 = vst [vmem:[#allocation2 + $0x20] sm:$0x1] %v643
        %vm660 = vcmask 122880
        %661 = vst.msk [vmem:[#allocation2 + $0x28] sm:$0x1] %vm660, %v645
        %v662 = vld [vmem:[#allocation2] sm:$0xff]
        %v663 = vld [vmem:[#allocation2 + $0x8] sm:$0xff]
        %v664 = vld [vmem:[#allocation2 + $0x10] sm:$0xff]
        %v665 = vld [vmem:[#allocation2 + $0x18] sm:$0xff]
        %v666 = vld [vmem:[#allocation6] sm:$0xff]
        %v667 = vld [vmem:[#allocation6 + $0x8] sm:$0xff]
        %v668 = vld [vmem:[#allocation6 + $0x10] sm:$0xff]
        %v669 = vld [vmem:[#allocation6 + $0x18] sm:$0xff]
        %v670 = vld [vmem:[#allocation6 + $0x20] sm:$0xff]
        %v671 = vld [vmem:[#allocation6 + $0x28] sm:$0xff]
        %v672 = vld [vmem:[#allocation6 + $0x30] sm:$0xff]
        %v673 = vld [vmem:[#allocation6 + $0x38] sm:$0xff]
        %v674 = vld [vmem:[#allocation6 + $0x40] sm:$0xff]
        %v675 = vld [vmem:[#allocation6 + $0x48] sm:$0xff]
        %v676 = vld [vmem:[#allocation6 + $0x50] sm:$0xff]
        %v677 = vld [vmem:[#allocation6 + $0x58] sm:$0xff]
        %v678 = vld [vmem:[#allocation6 + $0x60] sm:$0xff]
        %v679 = vld [vmem:[#allocation6 + $0x68] sm:$0xff]
        %v680 = vld [vmem:[#allocation6 + $0x70] sm:$0xff]
        %v681 = vld [vmem:[#allocation6 + $0x78] sm:$0xff]
        %v682 = vld [vmem:[#allocation6 + $0x80] sm:$0xff]
        %v683 = vld [vmem:[#allocation6 + $0x88] sm:$0xff]
        %v684 = vld [vmem:[#allocation2] sm:$0xfe]
        %v685 = vld [vmem:[#allocation2 + $0x8] sm:$0xfe]
        %v686 = vld [vmem:[#allocation2 + $0x20] sm:$0x1]
        %v687 = vld [vmem:[#allocation2 + $0x28] sm:$0x1]
        %s688 = scalar_lea.vmem [#allocation6], 144
        %v689 = vld [vmem:[%s688] sm:$0xff]
        %v690 = vld [vmem:[%s688 + $0x8] sm:$0xff]
        %v691 = vld [vmem:[%s688 + $0x10] sm:$0xff]
        %v692 = vld [vmem:[%s688 + $0x18] sm:$0xff]
        %v693 = vld [vmem:[%s688 + $0x20] sm:$0xff]
        %v694 = vld [vmem:[%s688 + $0x28] sm:$0xff]
        %v695 = vld [vmem:[%s688 + $0x30] sm:$0xff]
        %v696 = vld [vmem:[%s688 + $0x38] sm:$0xff]
        %v697 = vld [vmem:[%s688 + $0x40] sm:$0xff]
        %v698 = vld [vmem:[%s688 + $0x48] sm:$0xff]
        %v699 = vld [vmem:[%s688 + $0x50] sm:$0xff]
        %v700 = vld [vmem:[%s688 + $0x58] sm:$0xff]
        %v701 = vld [vmem:[%s688 + $0x60] sm:$0xff]
        %v702 = vld [vmem:[%s688 + $0x68] sm:$0xff]
        %v703 = vld [vmem:[%s688 + $0x70] sm:$0xff]
        %v704 = vld [vmem:[%s688 + $0x78] sm:$0xff]
        %v705 = vld [vmem:[%s688 + $0x80] sm:$0xff]
        %v706 = vld [vmem:[%s688 + $0x88] sm:$0xff]
        %vm713 = vcmask 1046528
        %v714 = vrot.slane %v684, 1
        %v715 = vrot.slane %v664, 1
        %v716 = vsel %vm713, %v714, %v715
        %v717 = vrot.slane %v685, 1
        %v718 = vrot.slane %v665, 1
        %v719 = vsel %vm713, %v717, %v718
        %v720 = vrot.slane %v686, 1
        %v721 = vsel %vm713, %v715, %v720
        %v722 = vrot.slane %v687, 1
        %v723 = vsel %vm713, %v718, %v722
        %v726 = vsel %vm657, %v719, 0
        %v728 = vsel %vm657, %v723, 0
        %730 = vmatprep.subr.mxu0 0.0
        %731 = vmatpush1.msra.mxu0 %v689
        %732 = vmatprep.subr.mxu0 0.0
        %733 = vmatpush1.msra.mxu0 %v690
        %734 = vmatprep.subr.mxu0 0.0
        %735 = vmatpush1.msra.mxu0 %v691
        %736 = vmatprep.subr.mxu0 0.0
        %737 = vmatpush1.msra.mxu0 %v692
        %738 = vmatprep.subr.mxu0 0.0
        %739 = vmatpush1.msra.mxu0 %v693
        %740 = vmatprep.subr.mxu0 0.0
        %741 = vmatpush1.msra.mxu0 %v694
        %742 = vmatprep.subr.mxu0 0.0
        %743 = vmatpush1.msra.mxu0 %v695
        %744 = vmatprep.subr.mxu0 0.0
        %745 = vmatpush1.msra.mxu0 %v696
        %746 = vmatprep.subr.mxu0 0.0
        %747 = vmatpush1.msra.mxu0 %v697
        %748 = vmatprep.subr.mxu0 0.0
        %749 = vmatpush1.msra.mxu0 %v698
        %750 = vmatprep.subr.mxu0 0.0
        %751 = vmatpush1.msra.mxu0 %v699
        %752 = vmatprep.subr.mxu0 0.0
        %753 = vmatpush1.msra.mxu0 %v700
        %754 = vmatprep.subr.mxu0 0.0
        %755 = vmatpush1.msra.mxu0 %v701
        %756 = vmatprep.subr.mxu0 0.0
        %757 = vmatpush1.msra.mxu0 %v702
        %758 = vmatprep.subr.mxu0 0.0
        %759 = vmatpush1.msra.mxu0 %v703
        %760 = vmatprep.subr.mxu0 0.0
        %761 = vmatpush1.msra.mxu0 %v704
        %762 = vmatprep.subr.mxu0 0.0
        %763 = vmatpush1.msra.mxu0 %v705
        %764 = vmatprep.subr.mxu0 0.0
        %765 = vmatpush1.msra.mxu0 %v706
        %766 = vmatprep.subr.mxu0 0.0
        %767 = vmatpush1.msra.mxu0 0.0
        %768 = vmatprep.subr.mxu0 0.0
        %769 = vmatpush1.msra.mxu0 0.0
        %770 = vmatprep.subr.mxu0 0.0
        %771 = vmatpush1.msra.mxu0 0.0
        %772 = vmatprep.subr.mxu0 0.0
        %773 = vmatpush1.msra.mxu0 0.0
        %774 = vmatprep.subr.mxu0 0.0
        %775 = vmatpush1.msra.mxu0 0.0
        %776 = vmatprep.subr.mxu0 0.0
        %777 = vmatpush1.msra.mxu0 0.0
        %778 = vmatprep.subr.mxu0 0.0
        %779 = vmatpush1.msra.mxu0 0.0
        %780 = vmatprep.subr.mxu0 0.0
        %781 = vmatpush1.msra.mxu0 0.0
        %782 = vmatprep.subr.mxu0 0.0
        %783 = vmatpush1.msra.mxu0 0.0
        %784 = vmatprep.subr.mxu0 0.0
        %785 = vmatpush1.msra.mxu0 0.0
        %786 = vmatprep.subr.mxu0 0.0
        %787 = vmatpush1.msra.mxu0 0.0
        %788 = vmatprep.subr.mxu0 0.0
        %789 = vmatpush1.msra.mxu0 0.0
        %790 = vmatprep.subr.mxu0 0.0
        %791 = vmatpush1.msra.mxu0 0.0
        %792 = vmatprep.subr.mxu0 0.0
        %793 = vmatpush1.msra.mxu0 0.0
        %794 = vmatprep.mubr.f32.mxu0 %v726
        %795 = vmatmul.mubr.f32.gmra.mrb[0].mxu0 %v716
        %v796 = vpop.f32.mrb[0].mxu0
        %v797 = vadd.f32 0.0, %v796
        %v798 = vpop.f32.mrb[0].mxu0
        %799 = vmatprep.mubr.f32.mxu0 %v728
        %800 = vmatmul.mubr.f32.gmra.mrb[0].mxu0 %v721
        %v801 = vpop.f32.mrb[0].mxu0
        %v802 = vadd.f32 0.0, %v801
        %v803 = vpop.f32.mrb[0].mxu0
        %804 = vdwg.mxu0
        %v806 = vsel %vm657, %v663, 0
        %v808 = vsel %vm657, %v665, 0
        %810 = vmatprep.subr.mxu0 0.0
        %811 = vmatpush1.msra.mxu0 %v666
        %812 = vmatprep.subr.mxu0 0.0
        %813 = vmatpush1.msra.mxu0 %v667
        %814 = vmatprep.subr.mxu0 0.0
        %815 = vmatpush1.msra.mxu0 %v668
        %816 = vmatprep.subr.mxu0 0.0
        %817 = vmatpush1.msra.mxu0 %v669
        %818 = vmatprep.subr.mxu0 0.0
        %819 = vmatpush1.msra.mxu0 %v670
        %820 = vmatprep.subr.mxu0 0.0
        %821 = vmatpush1.msra.mxu0 %v671
        %822 = vmatprep.subr.mxu0 0.0
        %823 = vmatpush1.msra.mxu0 %v672
        %824 = vmatprep.subr.mxu0 0.0
        %825 = vmatpush1.msra.mxu0 %v673
        %826 = vmatprep.subr.mxu0 0.0
        %827 = vmatpush1.msra.mxu0 %v674
        %828 = vmatprep.subr.mxu0 0.0
        %829 = vmatpush1.msra.mxu0 %v675
        %830 = vmatprep.subr.mxu0 0.0
        %831 = vmatpush1.msra.mxu0 %v676
        %832 = vmatprep.subr.mxu0 0.0
        %833 = vmatpush1.msra.mxu0 %v677
        %834 = vmatprep.subr.mxu0 0.0
        %835 = vmatpush1.msra.mxu0 %v678
        %836 = vmatprep.subr.mxu0 0.0
        %837 = vmatpush1.msra.mxu0 %v679
        %838 = vmatprep.subr.mxu0 0.0
        %839 = vmatpush1.msra.mxu0 %v680
        %840 = vmatprep.subr.mxu0 0.0
        %841 = vmatpush1.msra.mxu0 %v681
        %842 = vmatprep.subr.mxu0 0.0
        %843 = vmatpush1.msra.mxu0 %v682
        %844 = vmatprep.subr.mxu0 0.0
        %845 = vmatpush1.msra.mxu0 %v683
        %846 = vmatprep.subr.mxu0 0.0
        %847 = vmatpush1.msra.mxu0 0.0
        %848 = vmatprep.subr.mxu0 0.0
        %849 = vmatpush1.msra.mxu0 0.0
        %850 = vmatprep.subr.mxu0 0.0
        %851 = vmatpush1.msra.mxu0 0.0
        %852 = vmatprep.subr.mxu0 0.0
        %853 = vmatpush1.msra.mxu0 0.0
        %854 = vmatprep.subr.mxu0 0.0
        %855 = vmatpush1.msra.mxu0 0.0
        %856 = vmatprep.subr.mxu0 0.0
        %857 = vmatpush1.msra.mxu0 0.0
        %858 = vmatprep.subr.mxu0 0.0
        %859 = vmatpush1.msra.mxu0 0.0
        %860 = vmatprep.subr.mxu0 0.0
        %861 = vmatpush1.msra.mxu0 0.0
        %862 = vmatprep.subr.mxu0 0.0
        %863 = vmatpush1.msra.mxu0 0.0
        %864 = vmatprep.subr.mxu0 0.0
        %865 = vmatpush1.msra.mxu0 0.0
        %866 = vmatprep.subr.mxu0 0.0
        %867 = vmatpush1.msra.mxu0 0.0
        %868 = vmatprep.subr.mxu0 0.0
        %869 = vmatpush1.msra.mxu0 0.0
        %870 = vmatprep.subr.mxu0 0.0
        %871 = vmatpush1.msra.mxu0 0.0
        %872 = vmatprep.subr.mxu0 0.0
        %873 = vmatpush1.msra.mxu0 0.0
        %874 = vmatprep.mubr.f32.mxu0 %v806
        %875 = vmatmul.mubr.f32.gmra.mrb[0].mxu0 %v662
        %v876 = vpop.f32.mrb[0].mxu0
        %v877 = vadd.f32 %v797, %v876
        %v878 = vpop.f32.mrb[0].mxu0
        %879 = vmatprep.mubr.f32.mxu0 %v808
        %880 = vmatmul.mubr.f32.gmra.mrb[0].mxu0 %v664
        %v881 = vpop.f32.mrb[0].mxu0
        %v882 = vadd.f32 %v802, %v881
        %v883 = vpop.f32.mrb[0].mxu0
        %884 = vdwg.mxu0
        %v885 = vld [vmem:[#allocation2] sm:$0xfc]
        %v886 = vld [vmem:[#allocation2 + $0x8] sm:$0xfc]
        %v887 = vld [vmem:[#allocation2 + $0x20] sm:$0x3]
        %v888 = vld [vmem:[#allocation2 + $0x28] sm:$0x3]
        %s889 = scalar_lea.vmem [#allocation6], 288
        %v890 = vld [vmem:[%s889] sm:$0xff]
        %v891 = vld [vmem:[%s889 + $0x8] sm:$0xff]
        %v892 = vld [vmem:[%s889 + $0x10] sm:$0xff]
        %v893 = vld [vmem:[%s889 + $0x18] sm:$0xff]
        %v894 = vld [vmem:[%s889 + $0x20] sm:$0xff]
        %v895 = vld [vmem:[%s889 + $0x28] sm:$0xff]
        %v896 = vld [vmem:[%s889 + $0x30] sm:$0xff]
        %v897 = vld [vmem:[%s889 + $0x38] sm:$0xff]
        %v898 = vld [vmem:[%s889 + $0x40] sm:$0xff]
        %v899 = vld [vmem:[%s889 + $0x48] sm:$0xff]
        %v900 = vld [vmem:[%s889 + $0x50] sm:$0xff]
        %v901 = vld [vmem:[%s889 + $0x58] sm:$0xff]
        %v902 = vld [vmem:[%s889 + $0x60] sm:$0xff]
        %v903 = vld [vmem:[%s889 + $0x68] sm:$0xff]
        %v904 = vld [vmem:[%s889 + $0x70] sm:$0xff]
        %v905 = vld [vmem:[%s889 + $0x78] sm:$0xff]
        %v906 = vld [vmem:[%s889 + $0x80] sm:$0xff]
        %v907 = vld [vmem:[%s889 + $0x88] sm:$0xff]
        %vm912 = vcmask 1045504
        %v913 = vrot.slane %v885, 2
        %v914 = vrot.slane %v664, 2
        %v915 = vsel %vm912, %v913, %v914
        %v916 = vrot.slane %v886, 2
        %v917 = vrot.slane %v665, 2
        %v918 = vsel %vm912, %v916, %v917
        %v919 = vrot.slane %v887, 2
        %v920 = vsel %vm912, %v914, %v919
        %v921 = vrot.slane %v888, 2
        %v922 = vsel %vm912, %v917, %v921
        %v925 = vsel %vm657, %v918, 0
        %v927 = vsel %vm657, %v922, 0
        %929 = vmatprep.subr.mxu0 0.0
        %930 = vmatpush1.msra.mxu0 %v890
        %931 = vmatprep.subr.mxu0 0.0
        %932 = vmatpush1.msra.mxu0 %v891
        %933 = vmatprep.subr.mxu0 0.0
        %934 = vmatpush1.msra.mxu0 %v892
        %935 = vmatprep.subr.mxu0 0.0
        %936 = vmatpush1.msra.mxu0 %v893
        %937 = vmatprep.subr.mxu0 0.0
        %938 = vmatpush1.msra.mxu0 %v894
        %939 = vmatprep.subr.mxu0 0.0
        %940 = vmatpush1.msra.mxu0 %v895
        %941 = vmatprep.subr.mxu0 0.0
        %942 = vmatpush1.msra.mxu0 %v896
        %943 = vmatprep.subr.mxu0 0.0
        %944 = vmatpush1.msra.mxu0 %v897
        %945 = vmatprep.subr.mxu0 0.0
        %946 = vmatpush1.msra.mxu0 %v898
        %947 = vmatprep.subr.mxu0 0.0
        %948 = vmatpush1.msra.mxu0 %v899
        %949 = vmatprep.subr.mxu0 0.0
        %950 = vmatpush1.msra.mxu0 %v900
        %951 = vmatprep.subr.mxu0 0.0
        %952 = vmatpush1.msra.mxu0 %v901
        %953 = vmatprep.subr.mxu0 0.0
        %954 = vmatpush1.msra.mxu0 %v902
        %955 = vmatprep.subr.mxu0 0.0
        %956 = vmatpush1.msra.mxu0 %v903
        %957 = vmatprep.subr.mxu0 0.0
        %958 = vmatpush1.msra.mxu0 %v904
        %959 = vmatprep.subr.mxu0 0.0
        %960 = vmatpush1.msra.mxu0 %v905
        %961 = vmatprep.subr.mxu0 0.0
        %962 = vmatpush1.msra.mxu0 %v906
        %963 = vmatprep.subr.mxu0 0.0
        %964 = vmatpush1.msra.mxu0 %v907
        %965 = vmatprep.subr.mxu0 0.0
        %966 = vmatpush1.msra.mxu0 0.0
        %967 = vmatprep.subr.mxu0 0.0
        %968 = vmatpush1.msra.mxu0 0.0
        %969 = vmatprep.subr.mxu0 0.0
        %970 = vmatpush1.msra.mxu0 0.0
        %971 = vmatprep.subr.mxu0 0.0
        %972 = vmatpush1.msra.mxu0 0.0
        %973 = vmatprep.subr.mxu0 0.0
        %974 = vmatpush1.msra.mxu0 0.0
        %975 = vmatprep.subr.mxu0 0.0
        %976 = vmatpush1.msra.mxu0 0.0
        %977 = vmatprep.subr.mxu0 0.0
        %978 = vmatpush1.msra.mxu0 0.0
        %979 = vmatprep.subr.mxu0 0.0
        %980 = vmatpush1.msra.mxu0 0.0
        %981 = vmatprep.subr.mxu0 0.0
        %982 = vmatpush1.msra.mxu0 0.0
        %983 = vmatprep.subr.mxu0 0.0
        %984 = vmatpush1.msra.mxu0 0.0
        %985 = vmatprep.subr.mxu0 0.0
        %986 = vmatpush1.msra.mxu0 0.0
        %987 = vmatprep.subr.mxu0 0.0
        %988 = vmatpush1.msra.mxu0 0.0
        %989 = vmatprep.subr.mxu0 0.0
        %990 = vmatpush1.msra.mxu0 0.0
        %991 = vmatprep.subr.mxu0 0.0
        %992 = vmatpush1.msra.mxu0 0.0
        %993 = vmatprep.mubr.f32.mxu0 %v925
        %994 = vmatmul.mubr.f32.gmra.mrb[0].mxu0 %v915
        %v995 = vpop.f32.mrb[0].mxu0
        %v996 = vadd.f32 0.0, %v995
        %v997 = vpop.f32.mrb[0].mxu0
        %998 = vmatprep.mubr.f32.mxu0 %v927
        %999 = vmatmul.mubr.f32.gmra.mrb[0].mxu0 %v920
        %v1000 = vpop.f32.mrb[0].mxu0
        %v1001 = vadd.f32 0.0, %v1000
        %v1002 = vpop.f32.mrb[0].mxu0
        %1003 = vdwg.mxu0
        %v1004 = vadd.f32 %v877, %v996
        %v1005 = vadd.f32 %v882, %v1001
        %v1006 = vld [vmem:[%s4] sm:$0x1]
        %v1008 = vlaneseq
        %v1009 = vshrl.u32 %v1008, 7
        %v1010 = vsub.s32 0, %v1009
        %v1011 = vrot.slane %v1006, %v1010
        %v1013 = vadd.f32 %v1004, %v1011
        %v1014 = vadd.f32 %v1005, %v1011
        %v1015 = vmax.f32 %v1013, 0.0
        %v1016 = vmax.f32 %v1014, 0.0
        %1017 = vst [vmem:[%s278] sm:$0xff] %v1015
        %1018 = vst [vmem:[%s278 + $0x8] sm:$0xff] %v1016
        %v1019 = vld [vmem:[%s278] ss:$2 sm:$0xff]
        %s1020 = scalar_lea.vmem %s278, 1 [#allocation8]
        %v1021 = vld [vmem:[%s1020] ss:$2 sm:$0xff]
        %v1022 = vmax.f32 %v1019, %v1021
        %1024 = vrot.lane.b32.xlu0 %v1022, 64
        %v1025 = vpop.permute.xlu0 %1024
        %v1027 = vmax.f32 %v1022, %v1025
        %vm1028 = vcmask 523264
        %1029 = vst.msk [vmem:[%s285] sm:$0xff] %vm1028, %v1027
        %s1030 = sand.u32 %s144, 1
        %s1031 = scalar_lea.sflag [#allocation5], %s1030
        %s1032 = sand.u32 %s144, 1
        %s1033 = smul.addr %s1032, 16
        %s1034 = scalar_lea.vmem [#allocation8], %s1033
        %s1035 = sand.u32 %s170, 1
        %s1036 = scalar_lea.sflag [#allocation10], %s1035
        %s1037 = sand.u32 %s170, 1
        %s1038 = smul.addr %s1037, 8
        %s1039 = scalar_lea.vmem [#allocation9], %s1038
        // Predicated region
        $region49: #{tpu_custom_call.1} parent=39 // pred_check
          %p1040 = pneg %p154
        $region50: #{tpu_custom_call.1} parent=39 // pred_check_branch
          %1042 = sbr.rel (%p1040) target = $region52
        $region51: #{tpu_custom_call.1} parent=39 // pred_region
          %s1044 = ssub.s32 256, 256
          %1045 = vsyncadd %s1031, %s1044
          %s1046 = smul.addr %s26, 2
          %s1047 = smul.addr %s1046, 128
          %s1048 = scalar_lea.hbm %s5, %s1047
          %s1049 = sshll.u32 %s1034, 4
          %s1050 = int_to_ptr.vmem [resolvable:$true] %s1049
          %1055 = dma.vmem_to_hbm [thread:$0]  %s1050, 256, %s1048, %s1031, 128, 128, 8
        $region52: #{tpu_custom_call.1} parent=39 // pred_fallthru
          _
        // Predicated region
        $region53: #{tpu_custom_call.1} parent=39 // pred_check
          %p1056 = pneg %p180
        $region54: #{tpu_custom_call.1} parent=39 // pred_check_branch
          %1058 = sbr.rel (%p1056) target = $region56
        $region55: #{tpu_custom_call.1} parent=39 // pred_region
          %s1060 = ssub.s32 128, 128
          %1061 = vsyncadd %s1036, %s1060
          %s1062 = smul.addr %s26, 128
          %s1063 = scalar_lea.hbm %s6, %s1062
          %s1065 = sshll.u32 %s1039, 4
          %s1066 = int_to_ptr.vmem [resolvable:$true] %s1065
          %1068 = dma.vmem_to_hbm [thread:$0]  %s1066, 128, %s1063, %s1036
        $region56: #{tpu_custom_call.1} parent=39 // pred_fallthru
          _
      $region40: #{tpu_custom_call.1} parent=5 // pred_fallthru
        _
      %p1069 = scmp.le.s32.totalorder 2, %s21
      // Predicated region
      $region57: #{tpu_custom_call.1} parent=5 // pred_check
        %p1070 = pneg %p1069
      $region58: #{tpu_custom_call.1} parent=5 // pred_check_branch
        %1072 = sbr.rel (%p1070) target = $region60
      $region59: #{tpu_custom_call.1} parent=5 // pred_region
        %s1073 = ssub.s32 %s21, 2
        // Predicated region
        $region61: #{tpu_custom_call.1} parent=59 // pred_check
          %p1074 = pneg %p160
        $region62: #{tpu_custom_call.1} parent=59 // pred_check_branch
          %1076 = sbr.rel (%p1074) target = $region64
        $region63: #{tpu_custom_call.1} parent=59 // pred_region
          %s1077 = sand.u32 %s145, 1
          %s1078 = scalar_lea.sflag [#allocation5], %s1077
          %s1079 = sand.u32 %s145, 1
          %s1080 = smul.addr %s1079, 16
          %s1081 = scalar_lea.vmem [#allocation8], %s1080
          %1082 = dma.done %s1078, 256
        $region64: #{tpu_custom_call.1} parent=59 // pred_fallthru
          _
        // Predicated region
        $region65: #{tpu_custom_call.1} parent=59 // pred_check
          %p1083 = pneg %p186
        $region66: #{tpu_custom_call.1} parent=59 // pred_check_branch
          %1085 = sbr.rel (%p1083) target = $region68
        $region67: #{tpu_custom_call.1} parent=59 // pred_region
          %s1086 = sand.u32 %s171, 1
          %s1087 = scalar_lea.sflag [#allocation10], %s1086
          %s1088 = sand.u32 %s171, 1
          %s1089 = smul.addr %s1088, 8
          %s1090 = scalar_lea.vmem [#allocation9], %s1089
          %1091 = dma.done %s1087, 128
        $region68: #{tpu_custom_call.1} parent=59 // pred_fallthru
          _
      $region60: #{tpu_custom_call.1} parent=5 // pred_fallthru
        _
    $region6: #{tpu_custom_call.1} parent=1 // loop_footer
      %s25 = sadd.s32 1, %s21
    $region7: #{tpu_custom_call.1} parent=1 // loop_footer_branch
      %20 = sbr.rel target = $region3
    $region8: #{tpu_custom_call.1} parent=1 // loop_exit
      _
    %1092 = vsyncpa [#allocation4], 1
    %s1093 = scalar_lea.sflag [#allocation4], 1
    %1094 = vsyncpa %s1093, 1
    %1095 = vsyncpa [#allocation7], 1
    %1096 = vsyncpa [#allocation5], 1
    %s1097 = scalar_lea.sflag [#allocation5], 1
    %1098 = vsyncpa %s1097, 1
    %1099 = vsyncpa [#allocation10], 1
    %s1100 = scalar_lea.sflag [#allocation10], 1
    %1101 = vsyncpa %s1100, 1

</llo_original>
